<compile_context>
chip_gen: v6e
topology: v6e:2x2x1
jax: 0.10.0
libtpu: 0.0.40
codegen_flags: <defaults>
</compile_context>

<pallas_src>
import jax
import jax.numpy as jnp
import numpy as np
from jax import lax
from jax.experimental import pallas as pl
from jax.experimental.pallas import tpu as pltpu


def _residual_block_kernel(x_ref, w1_ref, b1_ref, w2_ref, ws_ref, b2_ref,
                           o_ref, xpad, ypad):
    """Fused residual block for one batch element (channels-folded layout).

    x_ref : (1, H, W*Cin)        f32  input image, lane-dense
    w1_ref: (3, W*Cin, W*Cout)   bf16 banded conv1 weights (BN1 scale folded)
    b1_ref: (1, W*Cout)          f32  conv1 bias + BN1 shift, tiled over w
    w2_ref: (3, W*Cout, W*Cout)  bf16 banded conv2 weights (BN2 scale folded)
    ws_ref: (W*Cin, W*Cout)      bf16 block-diagonal 1x1 skip weights
    b2_ref: (1, W*Cout)          f32  BN2 shift + conv2/conv3 biases, tiled
    o_ref : (1, H, W*Cout)       f32  output, lane-dense
    xpad  : (H+2, W*Cin)   f32 VMEM scratch; rows 0 / H+1 are the zero halo
    ypad  : (H+2, W*Cout)  f32 VMEM scratch; rows 0 / H+1 are the zero halo
    """
    _, H, wco = o_ref.shape
    wci = x_ref.shape[2]

    # Halo rows only (kw offsets / column padding are folded into the banded
    # weights). Zeroed every step so correctness does not depend on how the
    # batch grid is sharded across cores; this is 4 single-row stores, not a
    # full-buffer memset.
    zin = jnp.zeros((1, wci), jnp.float32)
    zout = jnp.zeros((1, wco), jnp.float32)
    xpad[0:1, :] = zin
    xpad[H + 1:H + 2, :] = zin
    ypad[0:1, :] = zout
    ypad[H + 1:H + 2, :] = zout

    # ----- conv1 + BN1 + ReLU (dropout = identity in eval mode) -----
    xpad[1:H + 1, :] = x_ref[0]
    acc1 = jnp.dot(xpad[0:H, :].astype(jnp.bfloat16), w1_ref[0],
                   preferred_element_type=jnp.float32)
    for kh in (1, 2):
        acc1 = acc1 + jnp.dot(xpad[kh:kh + H, :].astype(jnp.bfloat16),
                              w1_ref[kh], preferred_element_type=jnp.float32)
    y = jnp.maximum(acc1 + b1_ref[...], 0.0)        # folded BN1 shift + ReLU

    # ----- conv2 + BN2 + 1x1 skip + ReLU -----
    ypad[1:H + 1, :] = y
    acc2 = jnp.dot(xpad[1:H + 1, :].astype(jnp.bfloat16), ws_ref[...],
                   preferred_element_type=jnp.float32)   # 1x1 skip projection
    for kh in range(3):
        acc2 = acc2 + jnp.dot(ypad[kh:kh + H, :].astype(jnp.bfloat16),
                              w2_ref[kh], preferred_element_type=jnp.float32)
    o_ref[0] = jnp.maximum(acc2 + b2_ref[...], 0.0)  # BN2 shift + skip + ReLU


def residual_block_forward(x_nchw, kp):
    """Forward pass of ResidualBlock(use_1x1conv=True, stride=1), eval mode."""
    # TODO(synk): stride>1, training-mode dropout and batch-statistic BN are
    # not implemented in this instance (stride=1, eval semantics).
    x = jnp.transpose(x_nchw, (0, 2, 3, 1)).astype(jnp.float32)   # NCHW -> NHWC
    N, H, W, Cin = x.shape
    WCo = kp["w1b"].shape[-1]
    Cout = WCo // W
    xf = x.reshape(N, H, W * Cin)          # channels-folded, lane-dense view

    flops_img = 2 * (3 * H * (W * Cin) * WCo + 3 * H * WCo * WCo
                     + H * (W * Cin) * WCo)
    bytes_accessed = (xf.size * 4 + N * H * WCo * 4
                      + (kp["w1b"].size + kp["w2b"].size + kp["wsb"].size) * 2
                      + (kp["b1t"].size + kp["b2t"].size) * 4)

    out = pl.pallas_call(
        _residual_block_kernel,
        out_shape=jax.ShapeDtypeStruct((N, H, W * Cout), jnp.float32),
        grid_spec=pltpu.PrefetchScalarGridSpec(
            num_scalar_prefetch=0,
            grid=(N,),
            in_specs=[
                pl.BlockSpec((1, H, W * Cin), lambda n: (n, 0, 0)),
                pl.BlockSpec((3, W * Cin, WCo), lambda n: (0, 0, 0)),
                pl.BlockSpec((1, WCo), lambda n: (0, 0)),
                pl.BlockSpec((3, WCo, WCo), lambda n: (0, 0, 0)),
                pl.BlockSpec((W * Cin, WCo), lambda n: (0, 0)),
                pl.BlockSpec((1, WCo), lambda n: (0, 0)),
            ],
            out_specs=pl.BlockSpec((1, H, WCo), lambda n: (n, 0, 0)),
            scratch_shapes=[
                pltpu.VMEM((H + 2, W * Cin), jnp.float32),
                pltpu.VMEM((H + 2, WCo), jnp.float32),
            ],
        ),
        compiler_params=pltpu.CompilerParams(
            dimension_semantics=("parallel",),
        ),
        cost_estimate=pl.CostEstimate(
            flops=int(N * flops_img), transcendentals=0,
            bytes_accessed=int(bytes_accessed)),
    )(xf, kp["w1b"], kp["b1t"], kp["w2b"], kp["wsb"], kp["b2t"])

    out = out.reshape(N, H, W, Cout)
    return jnp.transpose(out, (0, 3, 1, 2))   # NHWC -> NCHW


# ---------------------------------------------------------------------------
# Parameter construction / folding and a pure-JAX reference.
# ---------------------------------------------------------------------------
def _make_raw_params(key, cin, cout):
    ks = jax.random.split(key, 15)
    return dict(
        # conv1 + bn1
        w1=0.1 * jax.random.normal(ks[0], (3, 3, cin, cout), jnp.float32),  # HWIO
        cb1=0.1 * jax.random.normal(ks[1], (cout,), jnp.float32),
        g1=1.0 + 0.1 * jax.random.normal(ks[2], (cout,), jnp.float32),
        be1=0.1 * jax.random.normal(ks[3], (cout,), jnp.float32),
        m1=0.1 * jax.random.normal(ks[4], (cout,), jnp.float32),
        v1=jax.random.uniform(ks[5], (cout,), jnp.float32, 0.5, 1.5),
        # conv2 + bn2
        w2=0.1 * jax.random.normal(ks[6], (3, 3, cout, cout), jnp.float32),
        cb2=0.1 * jax.random.normal(ks[7], (cout,), jnp.float32),
        g2=1.0 + 0.1 * jax.random.normal(ks[8], (cout,), jnp.float32),
        be2=0.1 * jax.random.normal(ks[9], (cout,), jnp.float32),
        m2=0.1 * jax.random.normal(ks[10], (cout,), jnp.float32),
        v2=jax.random.uniform(ks[11], (cout,), jnp.float32, 0.5, 1.5),
        # conv3 (1x1 skip projection)
        w3=0.1 * jax.random.normal(ks[12], (cin, cout), jnp.float32),
        cb3=0.1 * jax.random.normal(ks[13], (cout,), jnp.float32),
    )


def _fold_params(raw, W, eps=1e-5):
    """Fold BN (inference) + biases into kernel-ready banded weights/biases."""
    # NOTE: BN scale is baked into bf16 weights (as before); for tighter
    # accuracy keep weights bf16 but apply the per-channel scale in the f32
    # epilogue instead.
    cin = raw["w1"].shape[2]
    cout = raw["w1"].shape[3]
    s1 = raw["g1"] / jnp.sqrt(raw["v1"] + eps)
    s2 = raw["g2"] / jnp.sqrt(raw["v2"] + eps)
    w1s = np.asarray(raw["w1"] * s1)          # (3, 3, cin, cout), BN1-scaled
    w2s = np.asarray(raw["w2"] * s2)          # (3, 3, cout, cout), BN2-scaled
    w3 = np.asarray(raw["w3"])                # (cin, cout)

    def banded(wk, ci, co):
        # m[kh, c*ci+i, w*co+o] = wk[kh, kw, i, o] with c = w + kw - 1.
        # Taps that fall on the left/right SAME-padding (c < 0 or c >= W) are
        # dropped, which both implements the zero padding along w and makes
        # the matmul independent of any halo lanes.
        m = np.zeros((3, W * ci, W * co), np.float32)
        for kh in range(3):
            for kw in range(3):
                for w in range(W):
                    c = w + kw - 1
                    if 0 <= c < W:
                        m[kh, c * ci:(c + 1) * ci, w * co:(w + 1) * co] = wk[kh, kw]
        return m

    wsb = np.zeros((W * cin, W * cout), np.float32)   # block-diag 1x1 skip
    for w in range(W):
        wsb[w * cin:(w + 1) * cin, w * cout:(w + 1) * cout] = w3

    b1 = raw["be1"] + s1 * (raw["cb1"] - raw["m1"])
    b2 = raw["be2"] + s2 * (raw["cb2"] - raw["m2"]) + raw["cb3"]
    return dict(
        w1b=jnp.asarray(banded(w1s, cin, cout), dtype=jnp.bfloat16),
        w2b=jnp.asarray(banded(w2s, cout, cout), dtype=jnp.bfloat16),
        wsb=jnp.asarray(wsb, dtype=jnp.bfloat16),
        b1t=jnp.tile(jnp.asarray(b1, jnp.float32), W).reshape(1, W * cout),
        b2t=jnp.tile(jnp.asarray(b2, jnp.float32), W).reshape(1, W * cout),
    )


def _reference_forward(x_nchw, raw, eps=1e-5):
    """Pure-JAX f32 reference with the original (unfolded) BN semantics."""
    x = jnp.transpose(x_nchw, (0, 2, 3, 1)).astype(jnp.float32)
    dn = ("NHWC", "HWIO", "NHWC")
    y = lax.conv_general_dilated(x, raw["w1"], (1, 1), "SAME",
                                 dimension_numbers=dn) + raw["cb1"]
    y = (y - raw["m1"]) / jnp.sqrt(raw["v1"] + eps) * raw["g1"] + raw["be1"]
    y = jnp.maximum(y, 0.0)
    # dropout: identity (eval)
    y2 = lax.conv_general_dilated(y, raw["w2"], (1, 1), "SAME",
                                  dimension_numbers=dn) + raw["cb2"]
    y2 = (y2 - raw["m2"]) / jnp.sqrt(raw["v2"] + eps) * raw["g2"] + raw["be2"]
    skip = jnp.einsum("nhwc,co->nhwo", x, raw["w3"]) + raw["cb3"]
    out = jnp.maximum(y2 + skip, 0.0)
    return jnp.transpose(out, (0, 3, 1, 2))


if __name__ == "__main__":
    N, Cin, H, W, Cout = 2, 4, 16, 16, 8
    key = jax.random.PRNGKey(0)
    kx, kp = jax.random.split(key)
    x = jax.random.normal(kx, (N, Cin, H, W), jnp.float32)   # PyTorch NCHW input
    raw = _make_raw_params(kp, Cin, Cout)
    kparams = _fold_params(raw, W)

    fwd = jax.jit(residual_block_forward)
    out = jax.block_until_ready(fwd(x, kparams))

    ref = _reference_forward(x, raw)
    assert out.shape == (N, Cout, H, W), out.shape
    max_err = float(jnp.max(jnp.abs(out - ref)))
    # bf16 MXU operands (f32 accumulate) => loosened tolerance vs f32 reference.
    assert jnp.allclose(out, ref, atol=5e-2, rtol=5e-2), f"max_err={max_err}"
    print("KERNEL_OK")
</pallas_src>

<mosaic_0001>
module attributes {stable_mosaic.version = 11 : i64} {
  func.func @_residual_block_kernel(%arg0: i32, %arg1: memref<1x16x64xf32, #tpu.memory_space<vmem>>, %arg2: memref<3x64x128xbf16, #tpu.memory_space<vmem>>, %arg3: memref<1x128xf32, #tpu.memory_space<vmem>>, %arg4: memref<3x128x128xbf16, #tpu.memory_space<vmem>>, %arg5: memref<64x128xbf16, #tpu.memory_space<vmem>>, %arg6: memref<1x128xf32, #tpu.memory_space<vmem>>, %arg7: memref<1x16x128xf32, #tpu.memory_space<vmem>>, %arg8: memref<18x64xf32, #tpu.memory_space<vmem>>, %arg9: memref<18x128xf32, #tpu.memory_space<vmem>>) attributes {dimension_semantics = [#tpu.dimension_semantics<parallel>], iteration_bounds = array<i64: 2>, scalar_prefetch = 0 : i64, scratch_operands = 2 : i64, tpu.core_type = #tpu.core_type<tc>, window_params = [{transform_indices = @transform_0, window_bounds = array<i64: 1, 16, 64>}, {pipeline_mode = #tpu.pipeline_mode<synchronous>, transform_indices = @transform_1, window_bounds = array<i64: 3, 64, 128>}, {pipeline_mode = #tpu.pipeline_mode<synchronous>, transform_indices = @transform_2, window_bounds = array<i64: 1, 128>}, {pipeline_mode = #tpu.pipeline_mode<synchronous>, transform_indices = @transform_3, window_bounds = array<i64: 3, 128, 128>}, {pipeline_mode = #tpu.pipeline_mode<synchronous>, transform_indices = @transform_4, window_bounds = array<i64: 64, 128>}, {pipeline_mode = #tpu.pipeline_mode<synchronous>, transform_indices = @transform_5, window_bounds = array<i64: 1, 128>}, {transform_indices = @transform_6, window_bounds = array<i64: 1, 16, 128>}]} {
    %cst = arith.constant 0.000000e+00 : f32
    %0 = vector.broadcast %cst : f32 to vector<1x64xf32>
    %cst_0 = arith.constant 0.000000e+00 : f32
    %1 = vector.broadcast %cst_0 : f32 to vector<1x128xf32>
    %c0 = arith.constant 0 : index
    %c0_1 = arith.constant 0 : index
    %2 = vector.load %arg8[%c0, %c0_1] : memref<18x64xf32, #tpu.memory_space<vmem>>, vector<1x64xf32>
    tpu.vector_store %arg8[%c0, %c0_1], %0 {strides = array<i32>} : memref<18x64xf32, #tpu.memory_space<vmem>>, vector<1x64xf32>,
    %c17 = arith.constant 17 : index
    %c0_2 = arith.constant 0 : index
    %3 = vector.load %arg8[%c17, %c0_2] : memref<18x64xf32, #tpu.memory_space<vmem>>, vector<1x64xf32>
    tpu.vector_store %arg8[%c17, %c0_2], %0 {strides = array<i32>} : memref<18x64xf32, #tpu.memory_space<vmem>>, vector<1x64xf32>,
    %c0_3 = arith.constant 0 : index
    %c0_4 = arith.constant 0 : index
    %4 = vector.load %arg9[%c0_3, %c0_4] : memref<18x128xf32, #tpu.memory_space<vmem>>, vector<1x128xf32>
    tpu.vector_store %arg9[%c0_3, %c0_4], %1 {strides = array<i32>} : memref<18x128xf32, #tpu.memory_space<vmem>>, vector<1x128xf32>,
    %c17_5 = arith.constant 17 : index
    %c0_6 = arith.constant 0 : index
    %5 = vector.load %arg9[%c17_5, %c0_6] : memref<18x128xf32, #tpu.memory_space<vmem>>, vector<1x128xf32>
    tpu.vector_store %arg9[%c17_5, %c0_6], %1 {strides = array<i32>} : memref<18x128xf32, #tpu.memory_space<vmem>>, vector<1x128xf32>,
    %c0_7 = arith.constant 0 : index
    %c0_8 = arith.constant 0 : index
    %c0_9 = arith.constant 0 : index
    %6 = vector.load %arg1[%c0_7, %c0_8, %c0_9] : memref<1x16x64xf32, #tpu.memory_space<vmem>>, vector<1x16x64xf32>
    %7 = vector.shape_cast %6 : vector<1x16x64xf32> to vector<16x64xf32>
    %c1 = arith.constant 1 : index
    %c0_10 = arith.constant 0 : index
    %8 = vector.load %arg8[%c1, %c0_10] : memref<18x64xf32, #tpu.memory_space<vmem>>, vector<16x64xf32>
    tpu.vector_store %arg8[%c1, %c0_10], %7 {strides = array<i32>} : memref<18x64xf32, #tpu.memory_space<vmem>>, vector<16x64xf32>,
    %c0_11 = arith.constant 0 : index
    %c0_12 = arith.constant 0 : index
    %9 = vector.load %arg8[%c0_11, %c0_12] : memref<18x64xf32, #tpu.memory_space<vmem>>, vector<16x64xf32>
    %10 = arith.truncf %9 : vector<16x64xf32> to vector<16x64xbf16>
    %c0_13 = arith.constant 0 : index
    %c0_14 = arith.constant 0 : index
    %c0_15 = arith.constant 0 : index
    %11 = vector.load %arg2[%c0_13, %c0_14, %c0_15] : memref<3x64x128xbf16, #tpu.memory_space<vmem>>, vector<1x64x128xbf16>
    %12 = vector.shape_cast %11 : vector<1x64x128xbf16> to vector<64x128xbf16>
    %cst_16 = arith.constant dense<0.000000e+00> : vector<16x128xf32>
    %13 = tpu.matmul %10, %12, %cst_16 {dimension_numbers = #tpu.dot_dimension_numbers<[1], [0], [0], [1], [0, 0, 1, 1], [], []>} : vector<16x64xbf16>, vector<64x128xbf16>, vector<16x128xf32> -> vector<16x128xf32>
    %c1_17 = arith.constant 1 : index
    %c0_18 = arith.constant 0 : index
    %14 = vector.load %arg8[%c1_17, %c0_18] : memref<18x64xf32, #tpu.memory_space<vmem>>, vector<16x64xf32>
    %15 = arith.truncf %14 : vector<16x64xf32> to vector<16x64xbf16>
    %c1_19 = arith.constant 1 : index
    %c0_20 = arith.constant 0 : index
    %c0_21 = arith.constant 0 : index
    %16 = vector.load %arg2[%c1_19, %c0_20, %c0_21] : memref<3x64x128xbf16, #tpu.memory_space<vmem>>, vector<1x64x128xbf16>
    %17 = vector.shape_cast %16 : vector<1x64x128xbf16> to vector<64x128xbf16>
    %cst_22 = arith.constant dense<0.000000e+00> : vector<16x128xf32>
    %18 = tpu.matmul %15, %17, %cst_22 {dimension_numbers = #tpu.dot_dimension_numbers<[1], [0], [0], [1], [0, 0, 1, 1], [], []>} : vector<16x64xbf16>, vector<64x128xbf16>, vector<16x128xf32> -> vector<16x128xf32>
    %19 = arith.addf %13, %18 : vector<16x128xf32>
    %c2 = arith.constant 2 : index
    %c0_23 = arith.constant 0 : index
    %20 = vector.load %arg8[%c2, %c0_23] : memref<18x64xf32, #tpu.memory_space<vmem>>, vector<16x64xf32>
    %21 = arith.truncf %20 : vector<16x64xf32> to vector<16x64xbf16>
    %c2_24 = arith.constant 2 : index
    %c0_25 = arith.constant 0 : index
    %c0_26 = arith.constant 0 : index
    %22 = vector.load %arg2[%c2_24, %c0_25, %c0_26] : memref<3x64x128xbf16, #tpu.memory_space<vmem>>, vector<1x64x128xbf16>
    %23 = vector.shape_cast %22 : vector<1x64x128xbf16> to vector<64x128xbf16>
    %cst_27 = arith.constant dense<0.000000e+00> : vector<16x128xf32>
    %24 = tpu.matmul %21, %23, %cst_27 {dimension_numbers = #tpu.dot_dimension_numbers<[1], [0], [0], [1], [0, 0, 1, 1], [], []>} : vector<16x64xbf16>, vector<64x128xbf16>, vector<16x128xf32> -> vector<16x128xf32>
    %25 = arith.addf %19, %24 : vector<16x128xf32>
    %c0_28 = arith.constant 0 : index
    %c0_29 = arith.constant 0 : index
    %26 = vector.load %arg3[%c0_28, %c0_29] : memref<1x128xf32, #tpu.memory_space<vmem>>, vector<1x128xf32>
    %27 = vector.broadcast %26 : vector<1x128xf32> to vector<16x128xf32>
    %28 = arith.addf %25, %27 : vector<16x128xf32>
    %cst_30 = arith.constant 0.000000e+00 : f32
    %29 = vector.broadcast %cst_30 : f32 to vector<16x128xf32>
    %30 = arith.maximumf %28, %29 : vector<16x128xf32>
    %c1_31 = arith.constant 1 : index
    %c0_32 = arith.constant 0 : index
    %31 = vector.load %arg9[%c1_31, %c0_32] : memref<18x128xf32, #tpu.memory_space<vmem>>, vector<16x128xf32>
    tpu.vector_store %arg9[%c1_31, %c0_32], %30 {strides = array<i32>} : memref<18x128xf32, #tpu.memory_space<vmem>>, vector<16x128xf32>,
    %c1_33 = arith.constant 1 : index
    %c0_34 = arith.constant 0 : index
    %32 = vector.load %arg8[%c1_33, %c0_34] : memref<18x64xf32, #tpu.memory_space<vmem>>, vector<16x64xf32>
    %33 = arith.truncf %32 : vector<16x64xf32> to vector<16x64xbf16>
    %c0_35 = arith.constant 0 : index
    %c0_36 = arith.constant 0 : index
    %34 = vector.load %arg5[%c0_35, %c0_36] : memref<64x128xbf16, #tpu.memory_space<vmem>>, vector<64x128xbf16>
    %cst_37 = arith.constant dense<0.000000e+00> : vector<16x128xf32>
    %35 = tpu.matmul %33, %34, %cst_37 {dimension_numbers = #tpu.dot_dimension_numbers<[1], [0], [0], [1], [0, 0, 1, 1], [], []>} : vector<16x64xbf16>, vector<64x128xbf16>, vector<16x128xf32> -> vector<16x128xf32>
    %c0_38 = arith.constant 0 : index
    %c0_39 = arith.constant 0 : index
    %36 = vector.load %arg9[%c0_38, %c0_39] : memref<18x128xf32, #tpu.memory_space<vmem>>, vector<16x128xf32>
    %37 = arith.truncf %36 : vector<16x128xf32> to vector<16x128xbf16>
    %c0_40 = arith.constant 0 : index
    %c0_41 = arith.constant 0 : index
    %c0_42 = arith.constant 0 : index
    %38 = vector.load %arg4[%c0_40, %c0_41, %c0_42] : memref<3x128x128xbf16, #tpu.memory_space<vmem>>, vector<1x128x128xbf16>
    %39 = vector.shape_cast %38 : vector<1x128x128xbf16> to vector<128x128xbf16>
    %cst_43 = arith.constant dense<0.000000e+00> : vector<16x128xf32>
    %40 = tpu.matmul %37, %39, %cst_43 {dimension_numbers = #tpu.dot_dimension_numbers<[1], [0], [0], [1], [0, 0, 1, 1], [], []>} : vector<16x128xbf16>, vector<128x128xbf16>, vector<16x128xf32> -> vector<16x128xf32>
    %41 = arith.addf %35, %40 : vector<16x128xf32>
    %c1_44 = arith.constant 1 : index
    %c0_45 = arith.constant 0 : index
    %42 = vector.load %arg9[%c1_44, %c0_45] : memref<18x128xf32, #tpu.memory_space<vmem>>, vector<16x128xf32>
    %43 = arith.truncf %42 : vector<16x128xf32> to vector<16x128xbf16>
    %c1_46 = arith.constant 1 : index
    %c0_47 = arith.constant 0 : index
    %c0_48 = arith.constant 0 : index
    %44 = vector.load %arg4[%c1_46, %c0_47, %c0_48] : memref<3x128x128xbf16, #tpu.memory_space<vmem>>, vector<1x128x128xbf16>
    %45 = vector.shape_cast %44 : vector<1x128x128xbf16> to vector<128x128xbf16>
    %cst_49 = arith.constant dense<0.000000e+00> : vector<16x128xf32>
    %46 = tpu.matmul %43, %45, %cst_49 {dimension_numbers = #tpu.dot_dimension_numbers<[1], [0], [0], [1], [0, 0, 1, 1], [], []>} : vector<16x128xbf16>, vector<128x128xbf16>, vector<16x128xf32> -> vector<16x128xf32>
    %47 = arith.addf %41, %46 : vector<16x128xf32>
    %c2_50 = arith.constant 2 : index
    %c0_51 = arith.constant 0 : index
    %48 = vector.load %arg9[%c2_50, %c0_51] : memref<18x128xf32, #tpu.memory_space<vmem>>, vector<16x128xf32>
    %49 = arith.truncf %48 : vector<16x128xf32> to vector<16x128xbf16>
    %c2_52 = arith.constant 2 : index
    %c0_53 = arith.constant 0 : index
    %c0_54 = arith.constant 0 : index
    %50 = vector.load %arg4[%c2_52, %c0_53, %c0_54] : memref<3x128x128xbf16, #tpu.memory_space<vmem>>, vector<1x128x128xbf16>
    %51 = vector.shape_cast %50 : vector<1x128x128xbf16> to vector<128x128xbf16>
    %cst_55 = arith.constant dense<0.000000e+00> : vector<16x128xf32>
    %52 = tpu.matmul %49, %51, %cst_55 {dimension_numbers = #tpu.dot_dimension_numbers<[1], [0], [0], [1], [0, 0, 1, 1], [], []>} : vector<16x128xbf16>, vector<128x128xbf16>, vector<16x128xf32> -> vector<16x128xf32>
    %53 = arith.addf %47, %52 : vector<16x128xf32>
    %c0_56 = arith.constant 0 : index
    %c0_57 = arith.constant 0 : index
    %54 = vector.load %arg6[%c0_56, %c0_57] : memref<1x128xf32, #tpu.memory_space<vmem>>, vector<1x128xf32>
    %55 = vector.broadcast %54 : vector<1x128xf32> to vector<16x128xf32>
    %56 = arith.addf %53, %55 : vector<16x128xf32>
    %cst_58 = arith.constant 0.000000e+00 : f32
    %57 = vector.broadcast %cst_58 : f32 to vector<16x128xf32>
    %58 = arith.maximumf %56, %57 : vector<16x128xf32>
    %c0_59 = arith.constant 0 : index
    %c0_60 = arith.constant 0 : index
    %c0_61 = arith.constant 0 : index
    %59 = vector.load %arg7[%c0_59, %c0_60, %c0_61] : memref<1x16x128xf32, #tpu.memory_space<vmem>>, vector<1x16x128xf32>
    %60 = vector.shape_cast %59 : vector<1x16x128xf32> to vector<16x128xf32>
    %61 = vector.shape_cast %58 : vector<16x128xf32> to vector<1x16x128xf32>
    tpu.vector_store %arg7[%c0_59, %c0_60, %c0_61], %61 {strides = array<i32>} : memref<1x16x128xf32, #tpu.memory_space<vmem>>, vector<1x16x128xf32>,
    return
  }
  func.func @transform_0(%arg0: i32) -> (i32, i32, i32) {
    %c0_i32 = arith.constant 0 : i32
    %c0_i32_0 = arith.constant 0 : i32
    %c0_i32_1 = arith.constant 0 : i32
    return %arg0, %c0_i32, %c0_i32_0 : i32, i32, i32
  }
  func.func @transform_1(%arg0: i32) -> (i32, i32, i32) {
    %c0_i32 = arith.constant 0 : i32
    %c0_i32_0 = arith.constant 0 : i32
    %c0_i32_1 = arith.constant 0 : i32
    %c0_i32_2 = arith.constant 0 : i32
    return %c0_i32, %c0_i32_0, %c0_i32_1 : i32, i32, i32
  }
  func.func @transform_2(%arg0: i32) -> (i32, i32) {
    %c0_i32 = arith.constant 0 : i32
    %c0_i32_0 = arith.constant 0 : i32
    %c0_i32_1 = arith.constant 0 : i32
    return %c0_i32, %c0_i32_0 : i32, i32
  }
  func.func @transform_3(%arg0: i32) -> (i32, i32, i32) {
    %c0_i32 = arith.constant 0 : i32
    %c0_i32_0 = arith.constant 0 : i32
    %c0_i32_1 = arith.constant 0 : i32
    %c0_i32_2 = arith.constant 0 : i32
    return %c0_i32, %c0_i32_0, %c0_i32_1 : i32, i32, i32
  }
  func.func @transform_4(%arg0: i32) -> (i32, i32) {
    %c0_i32 = arith.constant 0 : i32
    %c0_i32_0 = arith.constant 0 : i32
    %c0_i32_1 = arith.constant 0 : i32
    return %c0_i32, %c0_i32_0 : i32, i32
  }
  func.func @transform_5(%arg0: i32) -> (i32, i32) {
    %c0_i32 = arith.constant 0 : i32
    %c0_i32_0 = arith.constant 0 : i32
    %c0_i32_1 = arith.constant 0 : i32
    return %c0_i32, %c0_i32_0 : i32, i32
  }
  func.func @transform_6(%arg0: i32) -> (i32, i32, i32) {
    %c0_i32 = arith.constant 0 : i32
    %c0_i32_0 = arith.constant 0 : i32
    %c0_i32_1 = arith.constant 0 : i32
    return %arg0, %c0_i32, %c0_i32_0 : i32, i32, i32
  }
}

</mosaic_0001>

<llo_original>
// kernel: residual_block_forward.1
$region0: #{residual_block_forward.1}
  #allocation0 [shape = 'u32[]', space=smem, size = 0x4, offset = 0x4, fixed_abs, tag = 'smem constant byte address 0x4 - core index']
  #allocation1 [shape = 'u32[144,128]{1,0:T(1,128)}', space=vmem, size = 0x12000, scoped, tag = 'internal scratch']
  #allocation2 [shape = 'f32[18,64]{1,0:T(8,128)}', space=vmem, size = 0x3000, scoped, tag = 'scratch operand']
  #allocation3 [shape = 'f32[18,128]{1,0:T(8,128)}', space=vmem, size = 0x3000, scoped, tag = 'scratch operand']
  %s0 = inlined_call_operand.vmem [shape: f32[2,16,64], index: 0, kind: input, shape index: {}]
  %s1 = inlined_call_operand.vmem [shape: bf16[3,64,128], index: 1, kind: input, shape index: {}]
  %s2 = inlined_call_operand.vmem [shape: f32[1,128], index: 2, kind: input, shape index: {}]
  %s3 = inlined_call_operand.vmem [shape: bf16[3,128,128], index: 3, kind: input, shape index: {}]
  %s4 = inlined_call_operand.vmem [shape: bf16[64,128], index: 4, kind: input, shape index: {}]
  %s5 = inlined_call_operand.vmem [shape: f32[1,128], index: 5, kind: input, shape index: {}]
  %s6 = inlined_call_operand.vmem [shape: f32[2,16,128], index: 6, kind: output, shape index: {}]
  %s7 = sld [smem:[#allocation0]]
  $region57: #{residual_block_forward.1} parent=0
    _
  %s9 = ssub.s32 1, %s7
  %s10 = scalar_select 0, %s9, %s7
  loop: start=0, step=1, limit=4
  $region2: #{residual_block_forward.1} parent=0 // loop_pre_header
    _
  $region3: #{residual_block_forward.1} parent=0 // loop_header
    %s12 = sphi 0, %s16
    %p13 = scmp.ge.s32.totalorder %s12, 4
    %s22 = sphi 0, %s24
    %s25 = sphi 0, %s22
    %s26 = sphi 0, %s25
    %s42 = sphi 0, %s26
    %s46 = sphi 0, %s46
    %s48 = sphi 0, %s46
    %s49 = sphi 0, %s48
    %s63 = sphi 0, %s49
    %s67 = sphi 0, %s67
    %s69 = sphi 0, %s67
    %s70 = sphi 0, %s69
    %s84 = sphi 0, %s70
    %s88 = sphi 0, %s88
    %s90 = sphi 0, %s88
    %s91 = sphi 0, %s90
    %s105 = sphi 0, %s91
    %s109 = sphi 0, %s109
    %s111 = sphi 0, %s109
    %s112 = sphi 0, %s111
    %s126 = sphi 0, %s112
    %s130 = sphi 0, %s130
    %s132 = sphi 0, %s130
    %s133 = sphi 0, %s132
    %s147 = sphi 0, %s133
    %s153 = sphi 0, %s155
    %s156 = sphi 0, %s153
    %s157 = sphi 0, %s156
    %s173 = sphi 0, %s157
  $region4: #{residual_block_forward.1} parent=0 // loop_header_branch
    %15 = sbr.rel (%p13) target = $region8
  $region5: #{residual_block_forward.1} parent=0 // loop_body
    %s17 = ssub.s32 %s12, 1
    %s18 = ssub.s32 %s12, 2
    %s19 = sadd.s32 %s12, 1
    %s20 = ssub.s32 %s12, %s19
    %p21 = scmp.eq.s32.totalorder %s20, 0
    %s23 = sadd.s32 %s22, 1
    %s24 = scalar_select %p21, %s22, %s23
    %p27 = pneg %p21
    %p28 = scmp.eq.s32.totalorder %s12, 1
    %p29 = por %p27, %p28
    %p30 = scmp.ne.s32.totalorder %s22, %s25
    %p31 = scmp.eq.s32.totalorder %s12, 0
    %p32 = por %p30, %p31
    %p33 = scmp.ne.s32.totalorder %s22, %s25
    %p34 = scmp.eq.s32.totalorder %s17, 1
    %p35 = por %p33, %p34
    %p36 = scmp.ne.s32.totalorder %s25, %s26
    %p37 = scmp.eq.s32.totalorder %s17, 0
    %p38 = por %p36, %p37
    %p39 = scmp.ne.s32.totalorder %s25, %s26
    %p40 = scmp.eq.s32.totalorder %s18, 1
    %p41 = por %p39, %p40
    %p43 = scmp.ne.s32.totalorder %s26, %s42
    %p44 = scmp.eq.s32.totalorder %s18, 0
    %p45 = por %p43, %p44
    %s47 = sadd.s32 %s46, 1
    %p50 = scmp.eq.s32.totalorder %s12, 1
    %p51 = scmp.ne.s32.totalorder %s46, %s48
    %p52 = scmp.eq.s32.totalorder %s12, 0
    %p53 = por %p51, %p52
    %p54 = scmp.ne.s32.totalorder %s46, %s48
    %p55 = scmp.eq.s32.totalorder %s17, 1
    %p56 = por %p54, %p55
    %p57 = scmp.ne.s32.totalorder %s48, %s49
    %p58 = scmp.eq.s32.totalorder %s17, 0
    %p59 = por %p57, %p58
    %p60 = scmp.ne.s32.totalorder %s48, %s49
    %p61 = scmp.eq.s32.totalorder %s18, 1
    %p62 = por %p60, %p61
    %p64 = scmp.ne.s32.totalorder %s49, %s63
    %p65 = scmp.eq.s32.totalorder %s18, 0
    %p66 = por %p64, %p65
    %s68 = sadd.s32 %s67, 1
    %p71 = scmp.eq.s32.totalorder %s12, 1
    %p72 = scmp.ne.s32.totalorder %s67, %s69
    %p73 = scmp.eq.s32.totalorder %s12, 0
    %p74 = por %p72, %p73
    %p75 = scmp.ne.s32.totalorder %s67, %s69
    %p76 = scmp.eq.s32.totalorder %s17, 1
    %p77 = por %p75, %p76
    %p78 = scmp.ne.s32.totalorder %s69, %s70
    %p79 = scmp.eq.s32.totalorder %s17, 0
    %p80 = por %p78, %p79
    %p81 = scmp.ne.s32.totalorder %s69, %s70
    %p82 = scmp.eq.s32.totalorder %s18, 1
    %p83 = por %p81, %p82
    %p85 = scmp.ne.s32.totalorder %s70, %s84
    %p86 = scmp.eq.s32.totalorder %s18, 0
    %p87 = por %p85, %p86
    %s89 = sadd.s32 %s88, 1
    %p92 = scmp.eq.s32.totalorder %s12, 1
    %p93 = scmp.ne.s32.totalorder %s88, %s90
    %p94 = scmp.eq.s32.totalorder %s12, 0
    %p95 = por %p93, %p94
    %p96 = scmp.ne.s32.totalorder %s88, %s90
    %p97 = scmp.eq.s32.totalorder %s17, 1
    %p98 = por %p96, %p97
    %p99 = scmp.ne.s32.totalorder %s90, %s91
    %p100 = scmp.eq.s32.totalorder %s17, 0
    %p101 = por %p99, %p100
    %p102 = scmp.ne.s32.totalorder %s90, %s91
    %p103 = scmp.eq.s32.totalorder %s18, 1
    %p104 = por %p102, %p103
    %p106 = scmp.ne.s32.totalorder %s91, %s105
    %p107 = scmp.eq.s32.totalorder %s18, 0
    %p108 = por %p106, %p107
    %s110 = sadd.s32 %s109, 1
    %p113 = scmp.eq.s32.totalorder %s12, 1
    %p114 = scmp.ne.s32.totalorder %s109, %s111
    %p115 = scmp.eq.s32.totalorder %s12, 0
    %p116 = por %p114, %p115
    %p117 = scmp.ne.s32.totalorder %s109, %s111
    %p118 = scmp.eq.s32.totalorder %s17, 1
    %p119 = por %p117, %p118
    %p120 = scmp.ne.s32.totalorder %s111, %s112
    %p121 = scmp.eq.s32.totalorder %s17, 0
    %p122 = por %p120, %p121
    %p123 = scmp.ne.s32.totalorder %s111, %s112
    %p124 = scmp.eq.s32.totalorder %s18, 1
    %p125 = por %p123, %p124
    %p127 = scmp.ne.s32.totalorder %s112, %s126
    %p128 = scmp.eq.s32.totalorder %s18, 0
    %p129 = por %p127, %p128
    %s131 = sadd.s32 %s130, 1
    %p134 = scmp.eq.s32.totalorder %s12, 1
    %p135 = scmp.ne.s32.totalorder %s130, %s132
    %p136 = scmp.eq.s32.totalorder %s12, 0
    %p137 = por %p135, %p136
    %p138 = scmp.ne.s32.totalorder %s130, %s132
    %p139 = scmp.eq.s32.totalorder %s17, 1
    %p140 = por %p138, %p139
    %p141 = scmp.ne.s32.totalorder %s132, %s133
    %p142 = scmp.eq.s32.totalorder %s17, 0
    %p143 = por %p141, %p142
    %p144 = scmp.ne.s32.totalorder %s132, %s133
    %p145 = scmp.eq.s32.totalorder %s18, 1
    %p146 = por %p144, %p145
    %p148 = scmp.ne.s32.totalorder %s133, %s147
    %p149 = scmp.eq.s32.totalorder %s18, 0
    %p150 = por %p148, %p149
    %s151 = ssub.s32 %s12, %s19
    %p152 = scmp.eq.s32.totalorder %s151, 0
    %s154 = sadd.s32 %s153, 1
    %s155 = scalar_select %p152, %s153, %s154
    %p158 = pneg %p152
    %p159 = scmp.eq.s32.totalorder %s12, 1
    %p160 = por %p158, %p159
    %p161 = scmp.ne.s32.totalorder %s153, %s156
    %p162 = scmp.eq.s32.totalorder %s12, 0
    %p163 = por %p161, %p162
    %p164 = scmp.ne.s32.totalorder %s153, %s156
    %p165 = scmp.eq.s32.totalorder %s17, 1
    %p166 = por %p164, %p165
    %p167 = scmp.ne.s32.totalorder %s156, %s157
    %p168 = scmp.eq.s32.totalorder %s17, 0
    %p169 = por %p167, %p168
    %p170 = scmp.ne.s32.totalorder %s156, %s157
    %p171 = scmp.eq.s32.totalorder %s18, 1
    %p172 = por %p170, %p171
    %p174 = scmp.ne.s32.totalorder %s157, %s173
    %p175 = scmp.eq.s32.totalorder %s18, 0
    %p176 = por %p174, %p175
    %p177 = scmp.le.s32.totalorder 1, %s12
    %p178 = scmp.lt.s32.totalorder %s12, 3
    %p179 = pnand %p177, %p178
    %p180 = pneg %p179
    // Predicated region
    $region9: #{residual_block_forward.1} parent=5 // pred_check
      _
    $region10: #{residual_block_forward.1} parent=5 // pred_check_branch
      %182 = sbr.rel (%p179) target = $region12
    $region11: #{residual_block_forward.1} parent=5 // pred_region
      %s183 = ssub.s32 %s12, 1
      // Predicated region
      $region13: #{residual_block_forward.1} parent=11 // pred_check
        %p184 = pneg %p59
      $region14: #{residual_block_forward.1} parent=11 // pred_check_branch
        %186 = sbr.rel (%p184) target = $region16
      $region15: #{residual_block_forward.1} parent=11 // pred_region
        _
      $region16: #{residual_block_forward.1} parent=11 // pred_fallthru
        _
      // Predicated region
      $region17: #{residual_block_forward.1} parent=11 // pred_check
        %p187 = pneg %p80
      $region18: #{residual_block_forward.1} parent=11 // pred_check_branch
        %189 = sbr.rel (%p187) target = $region20
      $region19: #{residual_block_forward.1} parent=11 // pred_region
        _
      $region20: #{residual_block_forward.1} parent=11 // pred_fallthru
        _
      // Predicated region
      $region21: #{residual_block_forward.1} parent=11 // pred_check
        %p190 = pneg %p101
      $region22: #{residual_block_forward.1} parent=11 // pred_check_branch
        %192 = sbr.rel (%p190) target = $region24
      $region23: #{residual_block_forward.1} parent=11 // pred_region
        _
      $region24: #{residual_block_forward.1} parent=11 // pred_fallthru
        _
      // Predicated region
      $region25: #{residual_block_forward.1} parent=11 // pred_check
        %p193 = pneg %p122
      $region26: #{residual_block_forward.1} parent=11 // pred_check_branch
        %195 = sbr.rel (%p193) target = $region28
      $region27: #{residual_block_forward.1} parent=11 // pred_region
        _
      $region28: #{residual_block_forward.1} parent=11 // pred_fallthru
        _
      // Predicated region
      $region29: #{residual_block_forward.1} parent=11 // pred_check
        %p196 = pneg %p143
      $region30: #{residual_block_forward.1} parent=11 // pred_check_branch
        %198 = sbr.rel (%p196) target = $region32
      $region31: #{residual_block_forward.1} parent=11 // pred_region
        _
      $region32: #{residual_block_forward.1} parent=11 // pred_fallthru
        _
    $region12: #{residual_block_forward.1} parent=5 // pred_fallthru
      _
    %p199 = scmp.lt.s32.totalorder %s12, 2
    // Predicated region
    $region33: #{residual_block_forward.1} parent=5 // pred_check
      %p200 = pneg %p199
    $region34: #{residual_block_forward.1} parent=5 // pred_check_branch
      %202 = sbr.rel (%p200) target = $region36
    $region35: #{residual_block_forward.1} parent=5 // pred_region
      // Predicated region
      $region37: #{residual_block_forward.1} parent=35 // pred_check
        %p203 = pneg %p32
      $region38: #{residual_block_forward.1} parent=35 // pred_check_branch
        %205 = sbr.rel (%p203) target = $region40
      $region39: #{residual_block_forward.1} parent=35 // pred_region
        %p206 = scmp.lt.s32.totalorder %s12, 1
        %s207 = scalar_select %p206, %s12, 1
        %s208 = smul.addr %s207, 2
        %s209 = smul.addr %s208, 8
        %s210 = scalar_lea.vmem %s0, %s209
      $region40: #{residual_block_forward.1} parent=35 // pred_fallthru
        _
    $region36: #{residual_block_forward.1} parent=5 // pred_fallthru
      _
    %p211 = scmp.le.s32.totalorder 1, %s12
    %p212 = scmp.lt.s32.totalorder %s12, 3
    %p213 = pnand %p211, %p212
    %p214 = pneg %p213
    // Predicated region
    $region41: #{residual_block_forward.1} parent=5 // pred_check
      _
    $region42: #{residual_block_forward.1} parent=5 // pred_check_branch
      %216 = sbr.rel (%p213) target = $region44
    $region43: #{residual_block_forward.1} parent=5 // pred_region
      %s217 = ssub.s32 %s12, 1
      %p218 = scmp.lt.s32.totalorder %s17, 1
      %s219 = scalar_select %p218, %s17, 1
      %s220 = smul.addr %s219, 2
      %s221 = smul.addr %s220, 8
      %s222 = scalar_lea.vmem %s0, %s221
      %p223 = pneg %p38
      %p224 = pneg %p35
      %p225 = pneg %p59
      %p226 = pneg %p56
      %p227 = pneg %p80
      %p228 = pneg %p77
      %p229 = pneg %p101
      %p230 = pneg %p98
      %p231 = pneg %p122
      %p232 = pneg %p119
      %p233 = pneg %p143
      %p234 = pneg %p140
      %p235 = pneg %p169
      %p236 = pneg %p166
      %p237 = scmp.lt.s32.totalorder %s17, 1
      %s238 = scalar_select %p237, %s17, 1
      %s239 = smul.addr %s238, 2
      %s240 = smul.addr %s239, 8
      %s241 = scalar_lea.vmem %s6, %s240
      %p242 = scmp.lt.s32.totalorder %s17, 1
      %s243 = scalar_select %p242, %s17, 1
      %s244 = smul.addr %s243, 2
      %s245 = smul.addr %s244, 8
      %s246 = scalar_lea.vmem %s0, %s245
      %p247 = scmp.lt.s32.totalorder %s17, 1
      %s248 = scalar_select %p247, %s17, 1
      %s249 = smul.addr %s248, 2
      %s250 = smul.addr %s249, 8
      %s251 = scalar_lea.vmem %s6, %s250
      %vm253 = vcmask 516096
      %254 = vst.msk [vmem:[#allocation2] sm:$0x1] %vm253, 0.0
      %255 = vst.msk [vmem:[#allocation2 + $0x11] sm:$0x1] %vm253, 0.0
      %256 = vst [vmem:[#allocation3] sm:$0x1] 0.0
      %257 = vst [vmem:[#allocation3 + $0x11] sm:$0x1] 0.0
      %v258 = vld [vmem:[%s246] sm:$0xff]
      %v259 = vld [vmem:[%s246 + $0x8] sm:$0xff]
      %vm260 = vcmask 523264
      %261 = vst.msk [vmem:[#allocation2 + $0x1] sm:$0xff] %vm260, %v258
      %262 = vst.msk [vmem:[#allocation2 + $0x9] sm:$0xff] %vm260, %v259
      %v263 = vld [vmem:[#allocation2] sm:$0xff]
      %v264 = vld [vmem:[#allocation2 + $0x8] sm:$0xff]
      %v265 = vpack.c.bf16 %v264, %v263
      %v266 = vld [vmem:[%s1] sm:$0xf]
      %v267 = vld [vmem:[%s1 + $0x4] sm:$0xf]
      %v268 = vld [vmem:[%s1 + $0x8] sm:$0xf]
      %v269 = vld [vmem:[%s1 + $0xc] sm:$0xf]
      %v270 = vld [vmem:[%s1 + $0x10] sm:$0xf]
      %v271 = vld [vmem:[%s1 + $0x14] sm:$0xf]
      %v272 = vld [vmem:[%s1 + $0x18] sm:$0xf]
      %v273 = vld [vmem:[%s1 + $0x1c] sm:$0xf]
      %v274 = vld [vmem:[#allocation2 + $0x1] sm:$0xff]
      %v275 = vld [vmem:[#allocation2 + $0x9] sm:$0xff]
      %v276 = vpack.c.bf16 %v275, %v274
      %s277 = scalar_lea.vmem %s1, 32
      %v278 = vld [vmem:[%s277] sm:$0xf]
      %v279 = vld [vmem:[%s277 + $0x4] sm:$0xf]
      %v280 = vld [vmem:[%s277 + $0x8] sm:$0xf]
      %v281 = vld [vmem:[%s277 + $0xc] sm:$0xf]
      %v282 = vld [vmem:[%s277 + $0x10] sm:$0xf]
      %v283 = vld [vmem:[%s277 + $0x14] sm:$0xf]
      %v284 = vld [vmem:[%s277 + $0x18] sm:$0xf]
      %v285 = vld [vmem:[%s277 + $0x1c] sm:$0xf]
      %v294 = vunpack.c.l.b16 %v278
      %v295 = vunpack.c.l.b16 %v279
      %v296 = vunpack.c.l.b16 %v280
      %v297 = vunpack.c.l.b16 %v281
      %v298 = vunpack.c.l.b16 %v282
      %v299 = vunpack.c.l.b16 %v283
      %v300 = vunpack.c.l.b16 %v284
      %v301 = vunpack.c.l.b16 %v285
      %v302 = vpack.c.b16 %v295, %v294
      %v303 = vpack.c.b16 %v297, %v296
      %v304 = vpack.c.b16 %v299, %v298
      %v305 = vpack.c.b16 %v301, %v300
      %v311 = vsel %vm260, %v276, 0
      %313 = vmatprep.subr.bf16.mxu0 0
      %314 = vmatpush1.bf16.msra.mxu0 0
      %315 = vmatprep.subr.bf16.mxu0 0
      %316 = vmatpush1.bf16.msra.mxu0 0
      %317 = vmatprep.subr.bf16.mxu0 0
      %318 = vmatpush1.bf16.msra.mxu0 0
      %319 = vmatprep.subr.bf16.mxu0 0
      %320 = vmatpush1.bf16.msra.mxu0 0
      %321 = vmatprep.subr.bf16.mxu0 0
      %322 = vmatpush1.bf16.msra.mxu0 %v305
      %323 = vmatprep.subr.bf16.mxu0 0
      %324 = vmatpush1.bf16.msra.mxu0 %v304
      %325 = vmatprep.subr.bf16.mxu0 0
      %326 = vmatpush1.bf16.msra.mxu0 %v303
      %327 = vmatprep.subr.bf16.mxu0 0
      %328 = vmatpush1.bf16.msra.mxu0 %v302
      %329 = vmatprep.subr.bf16.mxu0 0
      %330 = vmatpush2.bf16.msra.mxu0 0
      %331 = vmatprep.subr.bf16.mxu0 0
      %332 = vmatpush2.bf16.msra.mxu0 0
      %333 = vmatprep.subr.bf16.mxu0 0
      %334 = vmatpush2.bf16.msra.mxu0 0
      %335 = vmatprep.subr.bf16.mxu0 0
      %336 = vmatpush2.bf16.msra.mxu0 0
      %337 = vmatprep.subr.bf16.mxu0 0
      %338 = vmatpush2.bf16.msra.mxu0 0
      %339 = vmatprep.subr.bf16.mxu0 0
      %340 = vmatpush2.bf16.msra.mxu0 0
      %341 = vmatprep.subr.bf16.mxu0 0
      %342 = vmatpush2.bf16.msra.mxu0 0
      %343 = vmatprep.subr.bf16.mxu0 0
      %344 = vmatpush2.bf16.msra.mxu0 0
      %345 = vmatprep.mubr.bf16.mxu0 0
      %346 = vmatmul.mubr.bf16.gmra.mxu0 %v311
      %v347 = vpop.f32.mrf.mxu0
      %v348 = vadd.f32 0.0, %v347
      %v349 = vpop.f32.mrf.mxu0
      %v350 = vpop.f32.mrf.mxu0
      %v351 = vadd.f32 0.0, %v350
      %v352 = vpop.f32.mrf.mxu0
      %353 = vdwg.mxu0
      %v362 = vunpack.c.l.b16 %v266
      %v363 = vunpack.c.l.b16 %v267
      %v364 = vunpack.c.l.b16 %v268
      %v365 = vunpack.c.l.b16 %v269
      %v366 = vunpack.c.l.b16 %v270
      %v367 = vunpack.c.l.b16 %v271
      %v368 = vunpack.c.l.b16 %v272
      %v369 = vunpack.c.l.b16 %v273
      %v370 = vpack.c.b16 %v363, %v362
      %v371 = vpack.c.b16 %v365, %v364
      %v372 = vpack.c.b16 %v367, %v366
      %v373 = vpack.c.b16 %v369, %v368
      %v379 = vsel %vm260, %v265, 0
      %381 = vmatprep.subr.bf16.mxu0 0
      %382 = vmatpush1.bf16.msra.mxu0 0
      %383 = vmatprep.subr.bf16.mxu0 0
      %384 = vmatpush1.bf16.msra.mxu0 0
      %385 = vmatprep.subr.bf16.mxu0 0
      %386 = vmatpush1.bf16.msra.mxu0 0
      %387 = vmatprep.subr.bf16.mxu0 0
      %388 = vmatpush1.bf16.msra.mxu0 0
      %389 = vmatprep.subr.bf16.mxu0 0
      %390 = vmatpush1.bf16.msra.mxu0 %v373
      %391 = vmatprep.subr.bf16.mxu0 0
      %392 = vmatpush1.bf16.msra.mxu0 %v372
      %393 = vmatprep.subr.bf16.mxu0 0
      %394 = vmatpush1.bf16.msra.mxu0 %v371
      %395 = vmatprep.subr.bf16.mxu0 0
      %396 = vmatpush1.bf16.msra.mxu0 %v370
      %397 = vmatprep.subr.bf16.mxu0 0
      %398 = vmatpush2.bf16.msra.mxu0 0
      %399 = vmatprep.subr.bf16.mxu0 0
      %400 = vmatpush2.bf16.msra.mxu0 0
      %401 = vmatprep.subr.bf16.mxu0 0
      %402 = vmatpush2.bf16.msra.mxu0 0
      %403 = vmatprep.subr.bf16.mxu0 0
      %404 = vmatpush2.bf16.msra.mxu0 0
      %405 = vmatprep.subr.bf16.mxu0 0
      %406 = vmatpush2.bf16.msra.mxu0 0
      %407 = vmatprep.subr.bf16.mxu0 0
      %408 = vmatpush2.bf16.msra.mxu0 0
      %409 = vmatprep.subr.bf16.mxu0 0
      %410 = vmatpush2.bf16.msra.mxu0 0
      %411 = vmatprep.subr.bf16.mxu0 0
      %412 = vmatpush2.bf16.msra.mxu0 0
      %413 = vmatprep.mubr.bf16.mxu0 0
      %414 = vmatmul.mubr.bf16.gmra.mxu0 %v379
      %v415 = vpop.f32.mrf.mxu0
      %v416 = vadd.f32 %v348, %v415
      %v417 = vpop.f32.mrf.mxu0
      %v418 = vpop.f32.mrf.mxu0
      %v419 = vadd.f32 %v351, %v418
      %v420 = vpop.f32.mrf.mxu0
      %421 = vdwg.mxu0
      %v422 = vld [vmem:[#allocation2 + $0x2] sm:$0xff]
      %v423 = vld [vmem:[#allocation2 + $0xa] sm:$0xff]
      %v424 = vpack.c.bf16 %v423, %v422
      %s425 = scalar_lea.vmem %s1, 64
      %v426 = vld [vmem:[%s425] sm:$0xf]
      %v427 = vld [vmem:[%s425 + $0x4] sm:$0xf]
      %v428 = vld [vmem:[%s425 + $0x8] sm:$0xf]
      %v429 = vld [vmem:[%s425 + $0xc] sm:$0xf]
      %v430 = vld [vmem:[%s425 + $0x10] sm:$0xf]
      %v431 = vld [vmem:[%s425 + $0x14] sm:$0xf]
      %v432 = vld [vmem:[%s425 + $0x18] sm:$0xf]
      %v433 = vld [vmem:[%s425 + $0x1c] sm:$0xf]
      %v442 = vunpack.c.l.b16 %v426
      %v443 = vunpack.c.l.b16 %v427
      %v444 = vunpack.c.l.b16 %v428
      %v445 = vunpack.c.l.b16 %v429
      %v446 = vunpack.c.l.b16 %v430
      %v447 = vunpack.c.l.b16 %v431
      %v448 = vunpack.c.l.b16 %v432
      %v449 = vunpack.c.l.b16 %v433
      %v450 = vpack.c.b16 %v443, %v442
      %v451 = vpack.c.b16 %v445, %v444
      %v452 = vpack.c.b16 %v447, %v446
      %v453 = vpack.c.b16 %v449, %v448
      %v459 = vsel %vm260, %v424, 0
      %461 = vmatprep.subr.bf16.mxu0 0
      %462 = vmatpush1.bf16.msra.mxu0 0
      %463 = vmatprep.subr.bf16.mxu0 0
      %464 = vmatpush1.bf16.msra.mxu0 0
      %465 = vmatprep.subr.bf16.mxu0 0
      %466 = vmatpush1.bf16.msra.mxu0 0
      %467 = vmatprep.subr.bf16.mxu0 0
      %468 = vmatpush1.bf16.msra.mxu0 0
      %469 = vmatprep.subr.bf16.mxu0 0
      %470 = vmatpush1.bf16.msra.mxu0 %v453
      %471 = vmatprep.subr.bf16.mxu0 0
      %472 = vmatpush1.bf16.msra.mxu0 %v452
      %473 = vmatprep.subr.bf16.mxu0 0
      %474 = vmatpush1.bf16.msra.mxu0 %v451
      %475 = vmatprep.subr.bf16.mxu0 0
      %476 = vmatpush1.bf16.msra.mxu0 %v450
      %477 = vmatprep.subr.bf16.mxu0 0
      %478 = vmatpush2.bf16.msra.mxu0 0
      %479 = vmatprep.subr.bf16.mxu0 0
      %480 = vmatpush2.bf16.msra.mxu0 0
      %481 = vmatprep.subr.bf16.mxu0 0
      %482 = vmatpush2.bf16.msra.mxu0 0
      %483 = vmatprep.subr.bf16.mxu0 0
      %484 = vmatpush2.bf16.msra.mxu0 0
      %485 = vmatprep.subr.bf16.mxu0 0
      %486 = vmatpush2.bf16.msra.mxu0 0
      %487 = vmatprep.subr.bf16.mxu0 0
      %488 = vmatpush2.bf16.msra.mxu0 0
      %489 = vmatprep.subr.bf16.mxu0 0
      %490 = vmatpush2.bf16.msra.mxu0 0
      %491 = vmatprep.subr.bf16.mxu0 0
      %492 = vmatpush2.bf16.msra.mxu0 0
      %493 = vmatprep.mubr.bf16.mxu0 0
      %494 = vmatmul.mubr.bf16.gmra.mxu0 %v459
      %v495 = vpop.f32.mrf.mxu0
      %v496 = vadd.f32 0.0, %v495
      %v497 = vpop.f32.mrf.mxu0
      %v498 = vpop.f32.mrf.mxu0
      %v499 = vadd.f32 0.0, %v498
      %v500 = vpop.f32.mrf.mxu0
      %501 = vdwg.mxu0
      %v502 = vadd.f32 %v416, %v496
      %v503 = vadd.f32 %v419, %v499
      %v504 = vld [vmem:[%s2] sm:$0x1]
      %v506 = vlaneseq
      %v507 = vshrl.u32 %v506, 7
      %v508 = vsub.s32 0, %v507
      %v509 = vrot.slane %v504, %v508
      %v511 = vadd.f32 %v502, %v509
      %v512 = vadd.f32 %v503, %v509
      %v513 = vmax.f32 %v511, 0.0
      %v514 = vmax.f32 %v512, 0.0
      %515 = vst [vmem:[#allocation3 + $0x1] sm:$0xff] %v513
      %516 = vst [vmem:[#allocation3 + $0x9] sm:$0xff] %v514
      %v517 = vld [vmem:[#allocation2 + $0x1] sm:$0xff]
      %v518 = vld [vmem:[#allocation2 + $0x9] sm:$0xff]
      %v519 = vpack.c.bf16 %v518, %v517
      %v520 = vld [vmem:[%s4] sm:$0xf]
      %v521 = vld [vmem:[%s4 + $0x4] sm:$0xf]
      %v522 = vld [vmem:[%s4 + $0x8] sm:$0xf]
      %v523 = vld [vmem:[%s4 + $0xc] sm:$0xf]
      %v524 = vld [vmem:[%s4 + $0x10] sm:$0xf]
      %v525 = vld [vmem:[%s4 + $0x14] sm:$0xf]
      %v526 = vld [vmem:[%s4 + $0x18] sm:$0xf]
      %v527 = vld [vmem:[%s4 + $0x1c] sm:$0xf]
      %v528 = vld [vmem:[#allocation3] sm:$0xff]
      %v529 = vld [vmem:[#allocation3 + $0x8] sm:$0xff]
      %v530 = vpack.c.bf16 %v529, %v528
      %v531 = vld [vmem:[%s3] sm:$0xf]
      %v532 = vld [vmem:[%s3 + $0x4] sm:$0xf]
      %v533 = vld [vmem:[%s3 + $0x8] sm:$0xf]
      %v534 = vld [vmem:[%s3 + $0xc] sm:$0xf]
      %v535 = vld [vmem:[%s3 + $0x10] sm:$0xf]
      %v536 = vld [vmem:[%s3 + $0x14] sm:$0xf]
      %v537 = vld [vmem:[%s3 + $0x18] sm:$0xf]
      %v538 = vld [vmem:[%s3 + $0x1c] sm:$0xf]
      %v539 = vld [vmem:[%s3 + $0x20] sm:$0xf]
      %v540 = vld [vmem:[%s3 + $0x24] sm:$0xf]
      %v541 = vld [vmem:[%s3 + $0x28] sm:$0xf]
      %v542 = vld [vmem:[%s3 + $0x2c] sm:$0xf]
      %v543 = vld [vmem:[%s3 + $0x30] sm:$0xf]
      %v544 = vld [vmem:[%s3 + $0x34] sm:$0xf]
      %v545 = vld [vmem:[%s3 + $0x38] sm:$0xf]
      %v546 = vld [vmem:[%s3 + $0x3c] sm:$0xf]
      %v563 = vunpack.c.l.b16 %v531
      %v564 = vunpack.c.l.b16 %v532
      %v565 = vunpack.c.l.b16 %v533
      %v566 = vunpack.c.l.b16 %v534
      %v567 = vunpack.c.l.b16 %v535
      %v568 = vunpack.c.l.b16 %v536
      %v569 = vunpack.c.l.b16 %v537
      %v570 = vunpack.c.l.b16 %v538
      %v571 = vunpack.c.l.b16 %v539
      %v572 = vunpack.c.l.b16 %v540
      %v573 = vunpack.c.l.b16 %v541
      %v574 = vunpack.c.l.b16 %v542
      %v575 = vunpack.c.l.b16 %v543
      %v576 = vunpack.c.l.b16 %v544
      %v577 = vunpack.c.l.b16 %v545
      %v578 = vunpack.c.l.b16 %v546
      %v579 = vpack.c.b16 %v564, %v563
      %v580 = vpack.c.b16 %v566, %v565
      %v581 = vpack.c.b16 %v568, %v567
      %v582 = vpack.c.b16 %v570, %v569
      %v583 = vpack.c.b16 %v572, %v571
      %v584 = vpack.c.b16 %v574, %v573
      %v585 = vpack.c.b16 %v576, %v575
      %v586 = vpack.c.b16 %v578, %v577
      %595 = vmatprep.subr.bf16.mxu0 0
      %596 = vmatpush1.bf16.msra.mxu0 %v586
      %597 = vmatprep.subr.bf16.mxu0 0
      %598 = vmatpush1.bf16.msra.mxu0 %v585
      %599 = vmatprep.subr.bf16.mxu0 0
      %600 = vmatpush1.bf16.msra.mxu0 %v584
      %601 = vmatprep.subr.bf16.mxu0 0
      %602 = vmatpush1.bf16.msra.mxu0 %v583
      %603 = vmatprep.subr.bf16.mxu0 0
      %604 = vmatpush1.bf16.msra.mxu0 %v582
      %605 = vmatprep.subr.bf16.mxu0 0
      %606 = vmatpush1.bf16.msra.mxu0 %v581
      %607 = vmatprep.subr.bf16.mxu0 0
      %608 = vmatpush1.bf16.msra.mxu0 %v580
      %609 = vmatprep.subr.bf16.mxu0 0
      %610 = vmatpush1.bf16.msra.mxu0 %v579
      %611 = vmatprep.subr.bf16.mxu0 0
      %612 = vmatpush2.bf16.msra.mxu0 0
      %613 = vmatprep.subr.bf16.mxu0 0
      %614 = vmatpush2.bf16.msra.mxu0 0
      %615 = vmatprep.subr.bf16.mxu0 0
      %616 = vmatpush2.bf16.msra.mxu0 0
      %617 = vmatprep.subr.bf16.mxu0 0
      %618 = vmatpush2.bf16.msra.mxu0 0
      %619 = vmatprep.subr.bf16.mxu0 0
      %620 = vmatpush2.bf16.msra.mxu0 0
      %621 = vmatprep.subr.bf16.mxu0 0
      %622 = vmatpush2.bf16.msra.mxu0 0
      %623 = vmatprep.subr.bf16.mxu0 0
      %624 = vmatpush2.bf16.msra.mxu0 0
      %625 = vmatprep.subr.bf16.mxu0 0
      %626 = vmatpush2.bf16.msra.mxu0 0
      %627 = vmatprep.mubr.bf16.mxu0 0
      %628 = vmatmul.mubr.bf16.gmra.mxu0 %v530
      %v629 = vpop.f32.mrf.mxu0
      %v630 = vadd.f32 0.0, %v629
      %v631 = vpop.f32.mrf.mxu0
      %v632 = vpop.f32.mrf.mxu0
      %v633 = vadd.f32 0.0, %v632
      %v634 = vpop.f32.mrf.mxu0
      %635 = vdwg.mxu0
      %v644 = vunpack.c.l.b16 %v520
      %v645 = vunpack.c.l.b16 %v521
      %v646 = vunpack.c.l.b16 %v522
      %v647 = vunpack.c.l.b16 %v523
      %v648 = vunpack.c.l.b16 %v524
      %v649 = vunpack.c.l.b16 %v525
      %v650 = vunpack.c.l.b16 %v526
      %v651 = vunpack.c.l.b16 %v527
      %v652 = vpack.c.b16 %v645, %v644
      %v653 = vpack.c.b16 %v647, %v646
      %v654 = vpack.c.b16 %v649, %v648
      %v655 = vpack.c.b16 %v651, %v650
      %v661 = vsel %vm260, %v519, 0
      %663 = vmatprep.subr.bf16.mxu0 0
      %664 = vmatpush1.bf16.msra.mxu0 0
      %665 = vmatprep.subr.bf16.mxu0 0
      %666 = vmatpush1.bf16.msra.mxu0 0
      %667 = vmatprep.subr.bf16.mxu0 0
      %668 = vmatpush1.bf16.msra.mxu0 0
      %669 = vmatprep.subr.bf16.mxu0 0
      %670 = vmatpush1.bf16.msra.mxu0 0
      %671 = vmatprep.subr.bf16.mxu0 0
      %672 = vmatpush1.bf16.msra.mxu0 %v655
      %673 = vmatprep.subr.bf16.mxu0 0
      %674 = vmatpush1.bf16.msra.mxu0 %v654
      %675 = vmatprep.subr.bf16.mxu0 0
      %676 = vmatpush1.bf16.msra.mxu0 %v653
      %677 = vmatprep.subr.bf16.mxu0 0
      %678 = vmatpush1.bf16.msra.mxu0 %v652
      %679 = vmatprep.subr.bf16.mxu0 0
      %680 = vmatpush2.bf16.msra.mxu0 0
      %681 = vmatprep.subr.bf16.mxu0 0
      %682 = vmatpush2.bf16.msra.mxu0 0
      %683 = vmatprep.subr.bf16.mxu0 0
      %684 = vmatpush2.bf16.msra.mxu0 0
      %685 = vmatprep.subr.bf16.mxu0 0
      %686 = vmatpush2.bf16.msra.mxu0 0
      %687 = vmatprep.subr.bf16.mxu0 0
      %688 = vmatpush2.bf16.msra.mxu0 0
      %689 = vmatprep.subr.bf16.mxu0 0
      %690 = vmatpush2.bf16.msra.mxu0 0
      %691 = vmatprep.subr.bf16.mxu0 0
      %692 = vmatpush2.bf16.msra.mxu0 0
      %693 = vmatprep.subr.bf16.mxu0 0
      %694 = vmatpush2.bf16.msra.mxu0 0
      %695 = vmatprep.mubr.bf16.mxu0 0
      %696 = vmatmul.mubr.bf16.gmra.mxu0 %v661
      %v697 = vpop.f32.mrf.mxu0
      %v698 = vadd.f32 %v630, %v697
      %v699 = vpop.f32.mrf.mxu0
      %v700 = vpop.f32.mrf.mxu0
      %v701 = vadd.f32 %v633, %v700
      %v702 = vpop.f32.mrf.mxu0
      %703 = vdwg.mxu0
      %v704 = vld [vmem:[#allocation3 + $0x1] sm:$0xff]
      %v705 = vld [vmem:[#allocation3 + $0x9] sm:$0xff]
      %v706 = vpack.c.bf16 %v705, %v704
      %s707 = scalar_lea.vmem %s3, 64
      %v708 = vld [vmem:[%s707] sm:$0xf]
      %v709 = vld [vmem:[%s707 + $0x4] sm:$0xf]
      %v710 = vld [vmem:[%s707 + $0x8] sm:$0xf]
      %v711 = vld [vmem:[%s707 + $0xc] sm:$0xf]
      %v712 = vld [vmem:[%s707 + $0x10] sm:$0xf]
      %v713 = vld [vmem:[%s707 + $0x14] sm:$0xf]
      %v714 = vld [vmem:[%s707 + $0x18] sm:$0xf]
      %v715 = vld [vmem:[%s707 + $0x1c] sm:$0xf]
      %v716 = vld [vmem:[%s707 + $0x20] sm:$0xf]
      %v717 = vld [vmem:[%s707 + $0x24] sm:$0xf]
      %v718 = vld [vmem:[%s707 + $0x28] sm:$0xf]
      %v719 = vld [vmem:[%s707 + $0x2c] sm:$0xf]
      %v720 = vld [vmem:[%s707 + $0x30] sm:$0xf]
      %v721 = vld [vmem:[%s707 + $0x34] sm:$0xf]
      %v722 = vld [vmem:[%s707 + $0x38] sm:$0xf]
      %v723 = vld [vmem:[%s707 + $0x3c] sm:$0xf]
      %v740 = vunpack.c.l.b16 %v708
      %v741 = vunpack.c.l.b16 %v709
      %v742 = vunpack.c.l.b16 %v710
      %v743 = vunpack.c.l.b16 %v711
      %v744 = vunpack.c.l.b16 %v712
      %v745 = vunpack.c.l.b16 %v713
      %v746 = vunpack.c.l.b16 %v714
      %v747 = vunpack.c.l.b16 %v715
      %v748 = vunpack.c.l.b16 %v716
      %v749 = vunpack.c.l.b16 %v717
      %v750 = vunpack.c.l.b16 %v718
      %v751 = vunpack.c.l.b16 %v719
      %v752 = vunpack.c.l.b16 %v720
      %v753 = vunpack.c.l.b16 %v721
      %v754 = vunpack.c.l.b16 %v722
      %v755 = vunpack.c.l.b16 %v723
      %v756 = vpack.c.b16 %v741, %v740
      %v757 = vpack.c.b16 %v743, %v742
      %v758 = vpack.c.b16 %v745, %v744
      %v759 = vpack.c.b16 %v747, %v746
      %v760 = vpack.c.b16 %v749, %v748
      %v761 = vpack.c.b16 %v751, %v750
      %v762 = vpack.c.b16 %v753, %v752
      %v763 = vpack.c.b16 %v755, %v754
      %772 = vmatprep.subr.bf16.mxu0 0
      %773 = vmatpush1.bf16.msra.mxu0 %v763
      %774 = vmatprep.subr.bf16.mxu0 0
      %775 = vmatpush1.bf16.msra.mxu0 %v762
      %776 = vmatprep.subr.bf16.mxu0 0
      %777 = vmatpush1.bf16.msra.mxu0 %v761
      %778 = vmatprep.subr.bf16.mxu0 0
      %779 = vmatpush1.bf16.msra.mxu0 %v760
      %780 = vmatprep.subr.bf16.mxu0 0
      %781 = vmatpush1.bf16.msra.mxu0 %v759
      %782 = vmatprep.subr.bf16.mxu0 0
      %783 = vmatpush1.bf16.msra.mxu0 %v758
      %784 = vmatprep.subr.bf16.mxu0 0
      %785 = vmatpush1.bf16.msra.mxu0 %v757
      %786 = vmatprep.subr.bf16.mxu0 0
      %787 = vmatpush1.bf16.msra.mxu0 %v756
      %788 = vmatprep.subr.bf16.mxu0 0
      %789 = vmatpush2.bf16.msra.mxu0 0
      %790 = vmatprep.subr.bf16.mxu0 0
      %791 = vmatpush2.bf16.msra.mxu0 0
      %792 = vmatprep.subr.bf16.mxu0 0
      %793 = vmatpush2.bf16.msra.mxu0 0
      %794 = vmatprep.subr.bf16.mxu0 0
      %795 = vmatpush2.bf16.msra.mxu0 0
      %796 = vmatprep.subr.bf16.mxu0 0
      %797 = vmatpush2.bf16.msra.mxu0 0
      %798 = vmatprep.subr.bf16.mxu0 0
      %799 = vmatpush2.bf16.msra.mxu0 0
      %800 = vmatprep.subr.bf16.mxu0 0
      %801 = vmatpush2.bf16.msra.mxu0 0
      %802 = vmatprep.subr.bf16.mxu0 0
      %803 = vmatpush2.bf16.msra.mxu0 0
      %804 = vmatprep.mubr.bf16.mxu0 0
      %805 = vmatmul.mubr.bf16.gmra.mxu0 %v706
      %v806 = vpop.f32.mrf.mxu0
      %v807 = vadd.f32 0.0, %v806
      %v808 = vpop.f32.mrf.mxu0
      %v809 = vpop.f32.mrf.mxu0
      %v810 = vadd.f32 0.0, %v809
      %v811 = vpop.f32.mrf.mxu0
      %812 = vdwg.mxu0
      %v813 = vadd.f32 %v698, %v807
      %v814 = vadd.f32 %v701, %v810
      %v815 = vld [vmem:[#allocation3 + $0x2] sm:$0xff]
      %v816 = vld [vmem:[#allocation3 + $0xa] sm:$0xff]
      %v817 = vpack.c.bf16 %v816, %v815
      %s818 = scalar_lea.vmem %s3, 128
      %v819 = vld [vmem:[%s818] sm:$0xf]
      %v820 = vld [vmem:[%s818 + $0x4] sm:$0xf]
      %v821 = vld [vmem:[%s818 + $0x8] sm:$0xf]
      %v822 = vld [vmem:[%s818 + $0xc] sm:$0xf]
      %v823 = vld [vmem:[%s818 + $0x10] sm:$0xf]
      %v824 = vld [vmem:[%s818 + $0x14] sm:$0xf]
      %v825 = vld [vmem:[%s818 + $0x18] sm:$0xf]
      %v826 = vld [vmem:[%s818 + $0x1c] sm:$0xf]
      %v827 = vld [vmem:[%s818 + $0x20] sm:$0xf]
      %v828 = vld [vmem:[%s818 + $0x24] sm:$0xf]
      %v829 = vld [vmem:[%s818 + $0x28] sm:$0xf]
      %v830 = vld [vmem:[%s818 + $0x2c] sm:$0xf]
      %v831 = vld [vmem:[%s818 + $0x30] sm:$0xf]
      %v832 = vld [vmem:[%s818 + $0x34] sm:$0xf]
      %v833 = vld [vmem:[%s818 + $0x38] sm:$0xf]
      %v834 = vld [vmem:[%s818 + $0x3c] sm:$0xf]
      %v851 = vunpack.c.l.b16 %v819
      %v852 = vunpack.c.l.b16 %v820
      %v853 = vunpack.c.l.b16 %v821
      %v854 = vunpack.c.l.b16 %v822
      %v855 = vunpack.c.l.b16 %v823
      %v856 = vunpack.c.l.b16 %v824
      %v857 = vunpack.c.l.b16 %v825
      %v858 = vunpack.c.l.b16 %v826
      %v859 = vunpack.c.l.b16 %v827
      %v860 = vunpack.c.l.b16 %v828
      %v861 = vunpack.c.l.b16 %v829
      %v862 = vunpack.c.l.b16 %v830
      %v863 = vunpack.c.l.b16 %v831
      %v864 = vunpack.c.l.b16 %v832
      %v865 = vunpack.c.l.b16 %v833
      %v866 = vunpack.c.l.b16 %v834
      %v867 = vpack.c.b16 %v852, %v851
      %v868 = vpack.c.b16 %v854, %v853
      %v869 = vpack.c.b16 %v856, %v855
      %v870 = vpack.c.b16 %v858, %v857
      %v871 = vpack.c.b16 %v860, %v859
      %v872 = vpack.c.b16 %v862, %v861
      %v873 = vpack.c.b16 %v864, %v863
      %v874 = vpack.c.b16 %v866, %v865
      %883 = vmatprep.subr.bf16.mxu0 0
      %884 = vmatpush1.bf16.msra.mxu0 %v874
      %885 = vmatprep.subr.bf16.mxu0 0
      %886 = vmatpush1.bf16.msra.mxu0 %v873
      %887 = vmatprep.subr.bf16.mxu0 0
      %888 = vmatpush1.bf16.msra.mxu0 %v872
      %889 = vmatprep.subr.bf16.mxu0 0
      %890 = vmatpush1.bf16.msra.mxu0 %v871
      %891 = vmatprep.subr.bf16.mxu0 0
      %892 = vmatpush1.bf16.msra.mxu0 %v870
      %893 = vmatprep.subr.bf16.mxu0 0
      %894 = vmatpush1.bf16.msra.mxu0 %v869
      %895 = vmatprep.subr.bf16.mxu0 0
      %896 = vmatpush1.bf16.msra.mxu0 %v868
      %897 = vmatprep.subr.bf16.mxu0 0
      %898 = vmatpush1.bf16.msra.mxu0 %v867
      %899 = vmatprep.subr.bf16.mxu0 0
      %900 = vmatpush2.bf16.msra.mxu0 0
      %901 = vmatprep.subr.bf16.mxu0 0
      %902 = vmatpush2.bf16.msra.mxu0 0
      %903 = vmatprep.subr.bf16.mxu0 0
      %904 = vmatpush2.bf16.msra.mxu0 0
      %905 = vmatprep.subr.bf16.mxu0 0
      %906 = vmatpush2.bf16.msra.mxu0 0
      %907 = vmatprep.subr.bf16.mxu0 0
      %908 = vmatpush2.bf16.msra.mxu0 0
      %909 = vmatprep.subr.bf16.mxu0 0
      %910 = vmatpush2.bf16.msra.mxu0 0
      %911 = vmatprep.subr.bf16.mxu0 0
      %912 = vmatpush2.bf16.msra.mxu0 0
      %913 = vmatprep.subr.bf16.mxu0 0
      %914 = vmatpush2.bf16.msra.mxu0 0
      %915 = vmatprep.mubr.bf16.mxu0 0
      %916 = vmatmul.mubr.bf16.gmra.mxu0 %v817
      %v917 = vpop.f32.mrf.mxu0
      %v918 = vadd.f32 0.0, %v917
      %v919 = vpop.f32.mrf.mxu0
      %v920 = vpop.f32.mrf.mxu0
      %v921 = vadd.f32 0.0, %v920
      %v922 = vpop.f32.mrf.mxu0
      %923 = vdwg.mxu0
      %v924 = vadd.f32 %v813, %v918
      %v925 = vadd.f32 %v814, %v921
      %v926 = vld [vmem:[%s5] sm:$0x1]
      %v928 = vlaneseq
      %v929 = vshrl.u32 %v928, 7
      %v930 = vsub.s32 0, %v929
      %v931 = vrot.slane %v926, %v930
      %v933 = vadd.f32 %v924, %v931
      %v934 = vadd.f32 %v925, %v931
      %v935 = vmax.f32 %v933, 0.0
      %v936 = vmax.f32 %v934, 0.0
      %937 = vst [vmem:[%s251] sm:$0xff] %v935
      %938 = vst [vmem:[%s251 + $0x8] sm:$0xff] %v936
      %p939 = scmp.lt.s32.totalorder %s17, 1
      %s940 = scalar_select %p939, %s17, 1
      %s941 = smul.addr %s940, 2
      %s942 = smul.addr %s941, 8
      %s943 = scalar_lea.vmem %s6, %s942
      // Predicated region
      $region45: #{residual_block_forward.1} parent=43 // pred_check
        %p944 = pneg %p166
      $region46: #{residual_block_forward.1} parent=43 // pred_check_branch
        %946 = sbr.rel (%p944) target = $region48
      $region47: #{residual_block_forward.1} parent=43 // pred_region
        _
      $region48: #{residual_block_forward.1} parent=43 // pred_fallthru
        _
    $region44: #{residual_block_forward.1} parent=5 // pred_fallthru
      _
    %p947 = scmp.le.s32.totalorder 2, %s12
    // Predicated region
    $region49: #{residual_block_forward.1} parent=5 // pred_check
      %p948 = pneg %p947
    $region50: #{residual_block_forward.1} parent=5 // pred_check_branch
      %950 = sbr.rel (%p948) target = $region52
    $region51: #{residual_block_forward.1} parent=5 // pred_region
      %s951 = ssub.s32 %s12, 2
      // Predicated region
      $region53: #{residual_block_forward.1} parent=51 // pred_check
        %p952 = pneg %p172
      $region54: #{residual_block_forward.1} parent=51 // pred_check_branch
        %954 = sbr.rel (%p952) target = $region56
      $region55: #{residual_block_forward.1} parent=51 // pred_region
        %p955 = scmp.lt.s32.totalorder %s18, 1
        %s956 = scalar_select %p955, %s18, 1
        %s957 = smul.addr %s956, 2
        %s958 = smul.addr %s957, 8
        %s959 = scalar_lea.vmem %s6, %s958
      $region56: #{residual_block_forward.1} parent=51 // pred_fallthru
        _
    $region52: #{residual_block_forward.1} parent=5 // pred_fallthru
      _
  $region6: #{residual_block_forward.1} parent=0 // loop_footer
    %s16 = sadd.s32 1, %s12
  $region7: #{residual_block_forward.1} parent=0 // loop_footer_branch
    %11 = sbr.rel target = $region3
  $region8: #{residual_block_forward.1} parent=0 // loop_exit
    _

</llo_original>
